<compile_context>
chip_gen: v5e
topology: v5e:2x2
jax: 0.10.0
libtpu: 0.0.40
codegen_flags: <defaults>
</compile_context>

<pallas_src>
import functools

import jax
import jax.numpy as jnp
from jax.experimental import pallas as pl
from jax.experimental.pallas import tpu as pltpu


def _mlp_kernel(x_ref, w1_ref, b1_ref, w2_ref, b2_ref, o_ref, acc_ref):
    """One (M-tile, H-tile) step of: o = gelu_tanh(x @ w1 + b1) @ w2 + b2."""
    h_idx = pl.program_id(1)

    # fc1 partial over this hidden block (MXU, fp32 accumulate) + bias
    h = jnp.dot(x_ref[...], w1_ref[...], preferred_element_type=jnp.float32)
    h = h + b1_ref[...].astype(jnp.float32)

    # GELU, tanh approximation (matches nn.GELU(approximate='tanh')) — fp32 math
    c = jnp.float32(0.7978845608028654)  # sqrt(2/pi)
    g = 0.5 * h * (1.0 + jnp.tanh(c * (h + 0.044715 * (h * h * h))))

    # TODO(synk): dropout(p=0.1) is eval-mode identity here; training mode would mask
    # with pltpu.prng_seed + pltpu.prng_random_bits.

    # fc2 partial for this hidden block (MXU in compute dtype, fp32 accumulation)
    part = jnp.dot(g.astype(w2_ref.dtype), w2_ref[...],
                   preferred_element_type=jnp.float32)

    @pl.when(h_idx == 0)
    def _():
        acc_ref[...] = part          # first block: write directly (no zero-init)

    @pl.when(h_idx > 0)
    def _():
        acc_ref[...] += part

    @pl.when(h_idx == pl.num_programs(1) - 1)
    def _():
        o_ref[...] = (acc_ref[...] + b2_ref[...].astype(jnp.float32)).astype(o_ref.dtype)


@functools.lru_cache(maxsize=1)
def _vmem_capacity_bytes():
    try:
        return int(pltpu.get_tpu_info().vmem_capacity_bytes)
    except Exception:
        return 64 * 1024 * 1024  # conservative default (v7x per-TC VMEM)


def _pick_tiles(M, H):
    """Generation-sized (tm, th, vmem_limit_bytes)."""
    cap = _vmem_capacity_bytes()
    big_vmem = cap >= 128 * 1024 * 1024        # v5e / v6e
    tm_cap = 1024 if big_vmem else 512         # v7x budgets against 64 MiB VMEM
    th_cap = 1024 if big_vmem else 512
    vmem_limit = (100 if big_vmem else 48) * 1024 * 1024

    # --- M tile: flops/HBM-byte ~ tm (weights re-streamed per M tile), so go big ---
    if M <= tm_cap:
        tm = M
        # v7x: give the parallel M axis >= 2 tiles so both TensorCores get work.
        if not big_vmem and M >= 512 and (M // 2) % 128 == 0:
            tm = M // 2
    else:
        tm = tm_cap

    # --- H tile: largest divisor of H that is a multiple of 128 and <= cap ---
    th = H  # fallback for awkward (non-128-multiple) H: un-tiled reduction axis
    if H % 128 == 0:
        t = (min(th_cap, H) // 128) * 128
        while t >= 128:
            if H % t == 0:
                th = t
                break
            t -= 128
    return tm, th, vmem_limit


@functools.partial(jax.jit, static_argnames=("block_m", "block_h", "compute_dtype"))
def mlp_pallas(x, w1, b1, w2, b2, *, block_m=None, block_h=None,
               compute_dtype=jnp.bfloat16):
    """x: (B, S, E); w1: (E, H); b1: (H,); w2: (H, E); b2: (E,)."""
    B, S, E = x.shape
    H = w1.shape[1]
    M = B * S
    out_dtype = x.dtype

    tm_auto, th_auto, vmem_limit = _pick_tiles(M, H)
    tm = min(block_m, M) if block_m is not None else tm_auto
    th = min(block_h, H) if block_h is not None else th_auto
    if H % th != 0:          # reduction axis must tile exactly (no padded garbage)
        th = th_auto

    # Cast HBM-streamed operands to the MXU compute dtype BEFORE DMA so the dominant
    # weight traffic moves at compute-dtype width; biases stay fp32 for the fp32
    # accumulate path (and are tiny).
    x2d = x.reshape(M, E).astype(compute_dtype)
    w1c = w1.astype(compute_dtype)
    w2c = w2.astype(compute_dtype)
    b1f = b1.reshape(1, H).astype(jnp.float32)
    b2f = b2.reshape(1, E).astype(jnp.float32)

    gm = pl.cdiv(M, tm)
    nh = H // th
    grid = (gm, nh)

    # Serpentine traversal of the h axis: reverse direction on odd M tiles so the
    # last weight block of tile i is reused as the first block of tile i+1.
    def _h_serp(i, h):
        p = i % 2
        return h + p * (nh - 1 - 2 * h)

    cdt_size = jnp.dtype(compute_dtype).itemsize
    cost = pl.CostEstimate(
        flops=4 * M * E * H,                                   # two matmuls, 2*M*E*H each
        transcendentals=M * H,                                 # tanh
        bytes_accessed=(M * E * cdt_size                       # x read
                        + M * E * jnp.dtype(out_dtype).itemsize  # out write
                        + gm * 2 * E * H * cdt_size            # w1+w2, re-streamed per M tile
                        + (H + E) * 4),                        # fp32 biases
    )

    out2d = pl.pallas_call(
        _mlp_kernel,
        out_shape=jax.ShapeDtypeStruct((M, E), out_dtype),
        grid_spec=pltpu.PrefetchScalarGridSpec(
            num_scalar_prefetch=0,
            grid=grid,
            in_specs=[
                pl.BlockSpec((tm, E), lambda i, h: (i, 0)),               # x tile
                pl.BlockSpec((E, th), lambda i, h: (0, _h_serp(i, h))),   # w1 hidden block
                pl.BlockSpec((1, th), lambda i, h: (0, _h_serp(i, h))),   # b1 hidden block
                pl.BlockSpec((th, E), lambda i, h: (_h_serp(i, h), 0)),   # w2 hidden block
                pl.BlockSpec((1, E), lambda i, h: (0, 0)),                # b2
            ],
            out_specs=pl.BlockSpec((tm, E), lambda i, h: (i, 0)),
            scratch_shapes=[pltpu.VMEM((tm, E), jnp.float32)],            # fp32 accumulator
        ),
        compiler_params=pltpu.CompilerParams(
            dimension_semantics=("parallel", "arbitrary"),
            vmem_limit_bytes=vmem_limit,
        ),
        cost_estimate=cost,
    )(x2d, w1c, b1f, w2c, b2f)

    return out2d.reshape(B, S, E)


def _init_params(key, embed_dim, up_proj_factor=4, dtype=jnp.float32):
    """Deterministic nn.Linear-style init (uniform +- 1/sqrt(fan_in))."""
    hidden = embed_dim * up_proj_factor
    k1, k2, k3, k4 = jax.random.split(key, 4)
    bound1 = 1.0 / (embed_dim ** 0.5)
    bound2 = 1.0 / (hidden ** 0.5)
    # stored as (in, out) so the kernel does x @ w (no transpose at runtime)
    w1 = jax.random.uniform(k1, (embed_dim, hidden), dtype, -bound1, bound1)
    b1 = jax.random.uniform(k2, (hidden,), dtype, -bound1, bound1)
    w2 = jax.random.uniform(k3, (hidden, embed_dim), dtype, -bound2, bound2)
    b2 = jax.random.uniform(k4, (embed_dim,), dtype, -bound2, bound2)
    return w1, b1, w2, b2


def _reference(x, w1, b1, w2, b2):
    h = x @ w1 + b1
    g = 0.5 * h * (1.0 + jnp.tanh(0.7978845608028654 * (h + 0.044715 * h ** 3)))
    return g @ w2 + b2


if __name__ == "__main__":
    batch, seq, embed_dim, up = 2, 8, 32, 4
    key = jax.random.PRNGKey(0)
    kx, kp = jax.random.split(key)

    x = jax.random.normal(kx, (batch, seq, embed_dim), jnp.float32)
    w1, b1, w2, b2 = _init_params(kp, embed_dim, up)
    ref = _reference(x, w1, b1, w2, b2)

    # fp32 MXU path — tight tolerance (matches eval-mode PyTorch forward)
    out_f32 = jax.block_until_ready(
        mlp_pallas(x, w1, b1, w2, b2, compute_dtype=jnp.float32))
    assert out_f32.shape == (batch, seq, embed_dim)
    assert jnp.allclose(out_f32, ref, atol=1e-4, rtol=1e-4), "fp32 mismatch vs reference"

    # default production path: bf16 MXU operands, fp32 accumulation / fp32 GELU
    out_bf16 = jax.block_until_ready(mlp_pallas(x, w1, b1, w2, b2))
    assert out_bf16.shape == (batch, seq, embed_dim)
    assert jnp.allclose(out_bf16.astype(jnp.float32), ref, atol=5e-2, rtol=5e-2), \
        "bf16 mismatch vs reference"

    print("KERNEL_OK")
</pallas_src>

<mosaic_0001>
module attributes {stable_mosaic.version = 11 : i64} {
  func.func @_mlp_kernel(%arg0: i32, %arg1: i32, %arg2: memref<16x32xf32, #tpu.memory_space<vmem>>, %arg3: memref<32x128xf32, #tpu.memory_space<vmem>>, %arg4: memref<1x128xf32, #tpu.memory_space<vmem>>, %arg5: memref<128x32xf32, #tpu.memory_space<vmem>>, %arg6: memref<1x32xf32, #tpu.memory_space<vmem>>, %arg7: memref<16x32xf32, #tpu.memory_space<vmem>>, %arg8: memref<16x32xf32, #tpu.memory_space<vmem>>) attributes {dimension_semantics = [#tpu.dimension_semantics<parallel>, #tpu.dimension_semantics<arbitrary>], iteration_bounds = array<i64: 1, 1>, scalar_prefetch = 0 : i64, scratch_operands = 1 : i64, tpu.core_type = #tpu.core_type<tc>, window_params = [{transform_indices = @transform_0, window_bounds = array<i64: 16, 32>}, {transform_indices = @transform_1, window_bounds = array<i64: 32, 128>}, {transform_indices = @transform_2, window_bounds = array<i64: 1, 128>}, {transform_indices = @transform_3, window_bounds = array<i64: 128, 32>}, {pipeline_mode = #tpu.pipeline_mode<synchronous>, transform_indices = @transform_4, window_bounds = array<i64: 1, 32>}, {transform_indices = @transform_5, window_bounds = array<i64: 16, 32>}]} {
    %c0 = arith.constant 0 : index
    %c0_0 = arith.constant 0 : index
    %0 = vector.load %arg2[%c0, %c0_0] : memref<16x32xf32, #tpu.memory_space<vmem>>, vector<16x32xf32>
    %c0_1 = arith.constant 0 : index
    %c0_2 = arith.constant 0 : index
    %1 = vector.load %arg3[%c0_1, %c0_2] : memref<32x128xf32, #tpu.memory_space<vmem>>, vector<32x128xf32>
    %cst = arith.constant dense<0.000000e+00> : vector<16x128xf32>
    %2 = tpu.matmul %0, %1, %cst {dimension_numbers = #tpu.dot_dimension_numbers<[1], [0], [0], [1], [0, 0, 1, 1], [], []>} : vector<16x32xf32>, vector<32x128xf32>, vector<16x128xf32> -> vector<16x128xf32>
    %c0_3 = arith.constant 0 : index
    %c0_4 = arith.constant 0 : index
    %3 = vector.load %arg4[%c0_3, %c0_4] : memref<1x128xf32, #tpu.memory_space<vmem>>, vector<1x128xf32>
    %4 = vector.broadcast %3 : vector<1x128xf32> to vector<16x128xf32>
    %5 = arith.addf %2, %4 : vector<16x128xf32>
    %cst_5 = arith.constant 5.000000e-01 : f32
    %6 = vector.broadcast %cst_5 : f32 to vector<16x128xf32>
    %7 = arith.mulf %6, %5 : vector<16x128xf32>
    %8 = arith.mulf %5, %5 : vector<16x128xf32>
    %9 = arith.mulf %8, %5 : vector<16x128xf32>
    %cst_6 = arith.constant 4.471500e-02 : f32
    %10 = vector.broadcast %cst_6 : f32 to vector<16x128xf32>
    %11 = arith.mulf %10, %9 : vector<16x128xf32>
    %12 = arith.addf %5, %11 : vector<16x128xf32>
    %cst_7 = arith.constant 0.797884583 : f32
    %13 = vector.broadcast %cst_7 : f32 to vector<16x128xf32>
    %14 = arith.mulf %13, %12 : vector<16x128xf32>
    %15 = math.tanh %14 : vector<16x128xf32>
    %cst_8 = arith.constant 1.000000e+00 : f32
    %16 = vector.broadcast %cst_8 : f32 to vector<16x128xf32>
    %17 = arith.addf %16, %15 : vector<16x128xf32>
    %18 = arith.mulf %7, %17 : vector<16x128xf32>
    %c0_9 = arith.constant 0 : index
    %c0_10 = arith.constant 0 : index
    %19 = vector.load %arg5[%c0_9, %c0_10] : memref<128x32xf32, #tpu.memory_space<vmem>>, vector<128x32xf32>
    %cst_11 = arith.constant dense<0.000000e+00> : vector<16x32xf32>
    %20 = tpu.matmul %18, %19, %cst_11 {dimension_numbers = #tpu.dot_dimension_numbers<[1], [0], [0], [1], [0, 0, 1, 1], [], []>} : vector<16x128xf32>, vector<128x32xf32>, vector<16x32xf32> -> vector<16x32xf32>
    %c0_i32 = arith.constant 0 : i32
    %21 = arith.cmpi eq, %arg1, %c0_i32 : i32
    %22 = arith.extui %21 : i1 to i32
    %c0_i32_12 = arith.constant 0 : i32
    %23 = arith.cmpi ne, %22, %c0_i32_12 : i32
    scf.if %23 {
      %c0_17 = arith.constant 0 : index
      %c0_18 = arith.constant 0 : index
      %30 = vector.load %arg8[%c0_17, %c0_18] : memref<16x32xf32, #tpu.memory_space<vmem>>, vector<16x32xf32>
      tpu.vector_store %arg8[%c0_17, %c0_18], %20 {strides = array<i32>} : memref<16x32xf32, #tpu.memory_space<vmem>>, vector<16x32xf32>,
    } else {
    }
    %c0_i32_13 = arith.constant 0 : i32
    %24 = arith.cmpi sgt, %arg1, %c0_i32_13 : i32
    %25 = arith.extui %24 : i1 to i32
    %c0_i32_14 = arith.constant 0 : i32
    %26 = arith.cmpi ne, %25, %c0_i32_14 : i32
    scf.if %26 {
      %c0_17 = arith.constant 0 : index
      %c0_18 = arith.constant 0 : index
      %30 = vector.load %arg8[%c0_17, %c0_18] : memref<16x32xf32, #tpu.memory_space<vmem>>, vector<16x32xf32>
      %31 = arith.addf %30, %20 : vector<16x32xf32>
      %c0_19 = arith.constant 0 : index
      %c0_20 = arith.constant 0 : index
      %32 = vector.load %arg8[%c0_19, %c0_20] : memref<16x32xf32, #tpu.memory_space<vmem>>, vector<16x32xf32>
      tpu.vector_store %arg8[%c0_19, %c0_20], %31 {strides = array<i32>} : memref<16x32xf32, #tpu.memory_space<vmem>>, vector<16x32xf32>,
    } else {
    }
    %c0_i32_15 = arith.constant 0 : i32
    %27 = arith.cmpi eq, %arg1, %c0_i32_15 : i32
    %28 = arith.extui %27 : i1 to i32
    %c0_i32_16 = arith.constant 0 : i32
    %29 = arith.cmpi ne, %28, %c0_i32_16 : i32
    scf.if %29 {
      %c0_17 = arith.constant 0 : index
      %c0_18 = arith.constant 0 : index
      %30 = vector.load %arg8[%c0_17, %c0_18] : memref<16x32xf32, #tpu.memory_space<vmem>>, vector<16x32xf32>
      %c0_19 = arith.constant 0 : index
      %c0_20 = arith.constant 0 : index
      %31 = vector.load %arg6[%c0_19, %c0_20] : memref<1x32xf32, #tpu.memory_space<vmem>>, vector<1x32xf32>
      %32 = vector.broadcast %31 : vector<1x32xf32> to vector<16x32xf32>
      %33 = arith.addf %30, %32 : vector<16x32xf32>
      %c0_21 = arith.constant 0 : index
      %c0_22 = arith.constant 0 : index
      %34 = vector.load %arg7[%c0_21, %c0_22] : memref<16x32xf32, #tpu.memory_space<vmem>>, vector<16x32xf32>
      tpu.vector_store %arg7[%c0_21, %c0_22], %33 {strides = array<i32>} : memref<16x32xf32, #tpu.memory_space<vmem>>, vector<16x32xf32>,
    } else {
    }
    return
  }
  func.func @transform_0(%arg0: i32, %arg1: i32) -> (i32, i32) {
    %c0_i32 = arith.constant 0 : i32
    %c0_i32_0 = arith.constant 0 : i32
    return %arg0, %c0_i32 : i32, i32
  }
  func.func @transform_1(%arg0: i32, %arg1: i32) -> (i32, i32) {
    %c2_i32 = arith.constant 2 : i32
    %c0_i32 = arith.constant 0 : i32
    %0 = arith.cmpi eq, %c2_i32, %c0_i32 : i32
    %c1_i32 = arith.constant 1 : i32
    %1 = arith.select %0, %c1_i32, %c2_i32 : i32
    %2 = arith.remsi %arg0, %1 : i32
    %c0_i32_0 = arith.constant 0 : i32
    %3 = arith.cmpi ne, %2, %c0_i32_0 : i32
    %c0_i32_1 = arith.constant 0 : i32
    %4 = arith.cmpi slt, %2, %c0_i32_1 : i32
    %c0_i32_2 = arith.constant 0 : i32
    %5 = arith.cmpi slt, %1, %c0_i32_2 : i32
    %6 = arith.xori %4, %5 : i1
    %7 = arith.andi %6, %3 : i1
    %8 = arith.addi %2, %1 : i32
    %9 = arith.select %7, %8, %2 : i32
    %c2_i32_3 = arith.constant 2 : i32
    %10 = arith.muli %c2_i32_3, %arg1 : i32
    %c0_i32_4 = arith.constant 0 : i32
    %11 = arith.subi %c0_i32_4, %10 : i32
    %12 = arith.muli %9, %11 : i32
    %13 = arith.addi %arg1, %12 : i32
    %c0_i32_5 = arith.constant 0 : i32
    %c0_i32_6 = arith.constant 0 : i32
    return %c0_i32_5, %13 : i32, i32
  }
  func.func @transform_2(%arg0: i32, %arg1: i32) -> (i32, i32) {
    %c2_i32 = arith.constant 2 : i32
    %c0_i32 = arith.constant 0 : i32
    %0 = arith.cmpi eq, %c2_i32, %c0_i32 : i32
    %c1_i32 = arith.constant 1 : i32
    %1 = arith.select %0, %c1_i32, %c2_i32 : i32
    %2 = arith.remsi %arg0, %1 : i32
    %c0_i32_0 = arith.constant 0 : i32
    %3 = arith.cmpi ne, %2, %c0_i32_0 : i32
    %c0_i32_1 = arith.constant 0 : i32
    %4 = arith.cmpi slt, %2, %c0_i32_1 : i32
    %c0_i32_2 = arith.constant 0 : i32
    %5 = arith.cmpi slt, %1, %c0_i32_2 : i32
    %6 = arith.xori %4, %5 : i1
    %7 = arith.andi %6, %3 : i1
    %8 = arith.addi %2, %1 : i32
    %9 = arith.select %7, %8, %2 : i32
    %c2_i32_3 = arith.constant 2 : i32
    %10 = arith.muli %c2_i32_3, %arg1 : i32
    %c0_i32_4 = arith.constant 0 : i32
    %11 = arith.subi %c0_i32_4, %10 : i32
    %12 = arith.muli %9, %11 : i32
    %13 = arith.addi %arg1, %12 : i32
    %c0_i32_5 = arith.constant 0 : i32
    %c0_i32_6 = arith.constant 0 : i32
    return %c0_i32_5, %13 : i32, i32
  }
  func.func @transform_3(%arg0: i32, %arg1: i32) -> (i32, i32) {
    %c2_i32 = arith.constant 2 : i32
    %c0_i32 = arith.constant 0 : i32
    %0 = arith.cmpi eq, %c2_i32, %c0_i32 : i32
    %c1_i32 = arith.constant 1 : i32
    %1 = arith.select %0, %c1_i32, %c2_i32 : i32
    %2 = arith.remsi %arg0, %1 : i32
    %c0_i32_0 = arith.constant 0 : i32
    %3 = arith.cmpi ne, %2, %c0_i32_0 : i32
    %c0_i32_1 = arith.constant 0 : i32
    %4 = arith.cmpi slt, %2, %c0_i32_1 : i32
    %c0_i32_2 = arith.constant 0 : i32
    %5 = arith.cmpi slt, %1, %c0_i32_2 : i32
    %6 = arith.xori %4, %5 : i1
    %7 = arith.andi %6, %3 : i1
    %8 = arith.addi %2, %1 : i32
    %9 = arith.select %7, %8, %2 : i32
    %c2_i32_3 = arith.constant 2 : i32
    %10 = arith.muli %c2_i32_3, %arg1 : i32
    %c0_i32_4 = arith.constant 0 : i32
    %11 = arith.subi %c0_i32_4, %10 : i32
    %12 = arith.muli %9, %11 : i32
    %13 = arith.addi %arg1, %12 : i32
    %c0_i32_5 = arith.constant 0 : i32
    %c0_i32_6 = arith.constant 0 : i32
    return %13, %c0_i32_5 : i32, i32
  }
  func.func @transform_4(%arg0: i32, %arg1: i32) -> (i32, i32) {
    %c0_i32 = arith.constant 0 : i32
    %c0_i32_0 = arith.constant 0 : i32
    %c0_i32_1 = arith.constant 0 : i32
    return %c0_i32, %c0_i32_0 : i32, i32
  }
  func.func @transform_5(%arg0: i32, %arg1: i32) -> (i32, i32) {
    %c0_i32 = arith.constant 0 : i32
    %c0_i32_0 = arith.constant 0 : i32
    return %arg0, %c0_i32 : i32, i32
  }
}

</mosaic_0001>

<llo_original>
// kernel: mlp_pallas.1
$region0: #{mlp_pallas.1}
  #allocation0 [shape = 'u32[]', space=smem, size = 0x4, offset = 0x4, fixed_abs, tag = 'smem constant byte address 0x4 - core index']
  #allocation1 [shape = 'u32[72,128]{1,0:T(1,128)}', space=vmem, size = 0x9000, scoped, tag = 'internal scratch']
  #allocation2 [shape = 'f32[16,32]{1,0:T(8,128)}', space=vmem, size = 0x2000, scoped, tag = 'scratch operand']
  %s0 = inlined_call_operand.vmem [shape: f32[16,32], index: 0, kind: input, shape index: {}]
  %s1 = inlined_call_operand.vmem [shape: f32[32,128], index: 1, kind: input, shape index: {}]
  %s2 = inlined_call_operand.vmem [shape: f32[1,128], index: 2, kind: input, shape index: {}]
  %s3 = inlined_call_operand.vmem [shape: f32[128,32], index: 3, kind: input, shape index: {}]
  %s4 = inlined_call_operand.vmem [shape: f32[1,32], index: 4, kind: input, shape index: {}]
  %s5 = inlined_call_operand.hbm [shape: f32[16,32], index: 5, kind: output, shape index: {}]
  %s6 = sld [smem:[#allocation0]]
  $region42: #{mlp_pallas.1} parent=0
    _
  %s8 = ssub.s32 1, %s6
  %s9 = scalar_select 0, %s8, %s6
  $region1: #{mlp_pallas.1} parent=0
    #allocation3 [shape = 'u8[8192]{0}', space=vmem, size = 0x2000, scoped, tag = 'output window, operand 0, single buffered']
    #allocation4 [shape = 's32[1]{0}', space=sflag, size = 0x4, scoped, tag = 'scoped memory for mlp_pallas.1']
    %10 = vsyncpa [#allocation4], 0
    // Predicated region
    $region2: #{mlp_pallas.1} parent=1 // pred_check
      _
    $region3: #{mlp_pallas.1} parent=1 // pred_check_branch
      %12 = sbr.rel (0) target = $region5
    $region4: #{mlp_pallas.1} parent=1 // pred_region
      _
    $region5: #{mlp_pallas.1} parent=1 // pred_fallthru
      _
    // Predicated region
    $region6: #{mlp_pallas.1} parent=1 // pred_check
      _
    $region7: #{mlp_pallas.1} parent=1 // pred_check_branch
      %14 = sbr.rel (0) target = $region9
    $region8: #{mlp_pallas.1} parent=1 // pred_region
      %s15 = ssub.s32 0, 0
      %s16 = ssub.s32 0, 0
      %p17 = scmp.ne.s32.totalorder 0, 0
      %p18 = scmp.lt.s32.totalorder 0, 0
      %p19 = pnand %p18, %p17
      %p20 = pneg %p19
      %s21 = sadd.s32 0, 2
      %s22 = scalar_select %p20, %s21, 0
      %s23 = smul.u32 0, 2
      %s24 = ssub.s32 0, %s23
      %s25 = smul.u32 %s22, %s24
      %s26 = sadd.s32 0, %s25
      %p27 = scmp.lt.s32.totalorder %s26, 0
      %s28 = scalar_select %p27, %s26, 0
      %s29 = smul.addr %s28, 8
      %s30 = scalar_lea.vmem %s1, %s29
      %s31 = ssub.s32 0, 0
      %s32 = ssub.s32 0, 0
      %p33 = scmp.ne.s32.totalorder 0, 0
      %p34 = scmp.lt.s32.totalorder 0, 0
      %p35 = pnand %p34, %p33
      %p36 = pneg %p35
      %s37 = sadd.s32 0, 2
      %s38 = scalar_select %p36, %s37, 0
      %s39 = smul.u32 0, 2
      %s40 = ssub.s32 0, %s39
      %s41 = smul.u32 %s38, %s40
      %s42 = sadd.s32 0, %s41
    $region9: #{mlp_pallas.1} parent=1 // pred_fallthru
      _
    // Predicated region
    $region10: #{mlp_pallas.1} parent=1 // pred_check
      _
    $region11: #{mlp_pallas.1} parent=1 // pred_check_branch
      %44 = sbr.rel (0) target = $region13
    $region12: #{mlp_pallas.1} parent=1 // pred_region
      %s45 = ssub.s32 0, 0
      %s46 = ssub.s32 0, 0
      %p47 = scmp.ne.s32.totalorder 0, 0
      %p48 = scmp.lt.s32.totalorder 0, 0
      %p49 = pnand %p48, %p47
      %p50 = pneg %p49
      %s51 = sadd.s32 0, 2
      %s52 = scalar_select %p50, %s51, 0
      %s53 = smul.u32 0, 2
      %s54 = ssub.s32 0, %s53
      %s55 = smul.u32 %s52, %s54
      %s56 = sadd.s32 0, %s55
      %p57 = scmp.lt.s32.totalorder %s56, 0
      %s58 = scalar_select %p57, %s56, 0
      %s59 = scalar_lea.vmem %s2, %s58
      %s60 = ssub.s32 0, 0
      %s61 = ssub.s32 0, 0
      %p62 = scmp.ne.s32.totalorder 0, 0
      %p63 = scmp.lt.s32.totalorder 0, 0
      %p64 = pnand %p63, %p62
      %p65 = pneg %p64
      %s66 = sadd.s32 0, 2
      %s67 = scalar_select %p65, %s66, 0
      %s68 = smul.u32 0, 2
      %s69 = ssub.s32 0, %s68
      %s70 = smul.u32 %s67, %s69
      %s71 = sadd.s32 0, %s70
    $region13: #{mlp_pallas.1} parent=1 // pred_fallthru
      _
    // Predicated region
    $region14: #{mlp_pallas.1} parent=1 // pred_check
      _
    $region15: #{mlp_pallas.1} parent=1 // pred_check_branch
      %73 = sbr.rel (0) target = $region17
    $region16: #{mlp_pallas.1} parent=1 // pred_region
      %s74 = ssub.s32 0, 0
      %s75 = ssub.s32 0, 0
      %p76 = scmp.ne.s32.totalorder 0, 0
      %p77 = scmp.lt.s32.totalorder 0, 0
      %p78 = pnand %p77, %p76
      %p79 = pneg %p78
      %s80 = sadd.s32 0, 2
      %s81 = scalar_select %p79, %s80, 0
      %s82 = smul.u32 0, 2
      %s83 = ssub.s32 0, %s82
      %s84 = smul.u32 %s81, %s83
      %s85 = sadd.s32 0, %s84
      %s86 = smul.u32 16, %s85
      %p87 = scmp.lt.s32.totalorder %s86, 15
      %s88 = scalar_select %p87, %s86, 15
      %s89 = smul.addr %s88, 8
      %s90 = scalar_lea.vmem %s3, %s89
      %s91 = ssub.s32 0, 0
      %s92 = ssub.s32 0, 0
      %p93 = scmp.ne.s32.totalorder 0, 0
      %p94 = scmp.lt.s32.totalorder 0, 0
      %p95 = pnand %p94, %p93
      %p96 = pneg %p95
      %s97 = sadd.s32 0, 2
      %s98 = scalar_select %p96, %s97, 0
      %s99 = smul.u32 0, 2
      %s100 = ssub.s32 0, %s99
      %s101 = smul.u32 %s98, %s100
      %s102 = sadd.s32 0, %s101
      %s103 = smul.u32 16, %s102
    $region17: #{mlp_pallas.1} parent=1 // pred_fallthru
      _
    // Predicated region
    $region18: #{mlp_pallas.1} parent=1 // pred_check
      _
    $region19: #{mlp_pallas.1} parent=1 // pred_check_branch
      %105 = sbr.rel (0) target = $region21
    $region20: #{mlp_pallas.1} parent=1 // pred_region
      _
    $region21: #{mlp_pallas.1} parent=1 // pred_fallthru
      _
    %s106 = ssub.s32 0, 0
    %s107 = ssub.s32 0, 0
    %p108 = scmp.ne.s32.totalorder 0, 0
    %p109 = scmp.lt.s32.totalorder 0, 0
    %p110 = pnand %p109, %p108
    %p111 = pneg %p110
    %s112 = sadd.s32 0, 2
    %s113 = scalar_select %p111, %s112, 0
    %s114 = smul.u32 0, 2
    %s115 = ssub.s32 0, %s114
    %s116 = smul.u32 %s113, %s115
    %s117 = sadd.s32 0, %s116
    %p118 = scmp.lt.s32.totalorder %s117, 0
    %s119 = scalar_select %p118, %s117, 0
    %s120 = smul.addr %s119, 8
    %s121 = scalar_lea.vmem %s1, %s120
    %s122 = ssub.s32 0, 0
    %s123 = ssub.s32 0, 0
    %p124 = scmp.ne.s32.totalorder 0, 0
    %p125 = scmp.lt.s32.totalorder 0, 0
    %p126 = pnand %p125, %p124
    %p127 = pneg %p126
    %s128 = sadd.s32 0, 2
    %s129 = scalar_select %p127, %s128, 0
    %s130 = smul.u32 0, 2
    %s131 = ssub.s32 0, %s130
    %s132 = smul.u32 %s129, %s131
    %s133 = sadd.s32 0, %s132
    %p134 = scmp.lt.s32.totalorder %s133, 0
    %s135 = scalar_select %p134, %s133, 0
    %s136 = scalar_lea.vmem %s2, %s135
    %s137 = ssub.s32 0, 0
    %s138 = ssub.s32 0, 0
    %p139 = scmp.ne.s32.totalorder 0, 0
    %p140 = scmp.lt.s32.totalorder 0, 0
    %p141 = pnand %p140, %p139
    %p142 = pneg %p141
    %s143 = sadd.s32 0, 2
    %s144 = scalar_select %p142, %s143, 0
    %s145 = smul.u32 0, 2
    %s146 = ssub.s32 0, %s145
    %s147 = smul.u32 %s144, %s146
    %s148 = sadd.s32 0, %s147
    %s149 = smul.u32 16, %s148
    %p150 = scmp.lt.s32.totalorder %s149, 15
    %s151 = scalar_select %p150, %s149, 15
    %s152 = smul.addr %s151, 8
    %s153 = scalar_lea.vmem %s3, %s152
    %s154 = ssub.s32 0, 0
    %s155 = ssub.s32 0, 0
    %p156 = scmp.ne.s32.totalorder 0, 0
    %p157 = scmp.lt.s32.totalorder 0, 0
    %p158 = pnand %p157, %p156
    %p159 = pneg %p158
    %s160 = sadd.s32 0, 2
    %s161 = scalar_select %p159, %s160, 0
    %s162 = smul.u32 0, 2
    %s163 = ssub.s32 0, %s162
    %s164 = smul.u32 %s161, %s163
    %s165 = sadd.s32 0, %s164
    %p166 = scmp.lt.s32.totalorder %s165, 0
    %s167 = scalar_select %p166, %s165, 0
    %s168 = smul.addr %s167, 8
    %s169 = scalar_lea.vmem %s1, %s168
    %s170 = ssub.s32 0, 0
    %s171 = ssub.s32 0, 0
    %p172 = scmp.ne.s32.totalorder 0, 0
    %p173 = scmp.lt.s32.totalorder 0, 0
    %p174 = pnand %p173, %p172
    %p175 = pneg %p174
    %s176 = sadd.s32 0, 2
    %s177 = scalar_select %p175, %s176, 0
    %s178 = smul.u32 0, 2
    %s179 = ssub.s32 0, %s178
    %s180 = smul.u32 %s177, %s179
    %s181 = sadd.s32 0, %s180
    %s182 = ssub.s32 0, 0
    %s183 = ssub.s32 0, 0
    %p184 = scmp.ne.s32.totalorder 0, 0
    %p185 = scmp.lt.s32.totalorder 0, 0
    %p186 = pnand %p185, %p184
    %p187 = pneg %p186
    %s188 = sadd.s32 0, 2
    %s189 = scalar_select %p187, %s188, 0
    %s190 = smul.u32 0, 2
    %s191 = ssub.s32 0, %s190
    %s192 = smul.u32 %s189, %s191
    %s193 = sadd.s32 0, %s192
    %p194 = scmp.lt.s32.totalorder %s193, 0
    %s195 = scalar_select %p194, %s193, 0
    %s196 = scalar_lea.vmem %s2, %s195
    %s197 = ssub.s32 0, 0
    %s198 = ssub.s32 0, 0
    %p199 = scmp.ne.s32.totalorder 0, 0
    %p200 = scmp.lt.s32.totalorder 0, 0
    %p201 = pnand %p200, %p199
    %p202 = pneg %p201
    %s203 = sadd.s32 0, 2
    %s204 = scalar_select %p202, %s203, 0
    %s205 = smul.u32 0, 2
    %s206 = ssub.s32 0, %s205
    %s207 = smul.u32 %s204, %s206
    %s208 = sadd.s32 0, %s207
    %s209 = ssub.s32 0, 0
    %s210 = ssub.s32 0, 0
    %p211 = scmp.ne.s32.totalorder 0, 0
    %p212 = scmp.lt.s32.totalorder 0, 0
    %p213 = pnand %p212, %p211
    %p214 = pneg %p213
    %s215 = sadd.s32 0, 2
    %s216 = scalar_select %p214, %s215, 0
    %s217 = smul.u32 0, 2
    %s218 = ssub.s32 0, %s217
    %s219 = smul.u32 %s216, %s218
    %s220 = sadd.s32 0, %s219
    %s221 = smul.u32 16, %s220
    %p222 = scmp.lt.s32.totalorder %s221, 15
    %s223 = scalar_select %p222, %s221, 15
    %s224 = smul.addr %s223, 8
    %s225 = scalar_lea.vmem %s3, %s224
    %s226 = ssub.s32 0, 0
    %s227 = ssub.s32 0, 0
    %p228 = scmp.ne.s32.totalorder 0, 0
    %p229 = scmp.lt.s32.totalorder 0, 0
    %p230 = pnand %p229, %p228
    %p231 = pneg %p230
    %s232 = sadd.s32 0, 2
    %s233 = scalar_select %p231, %s232, 0
    %s234 = smul.u32 0, 2
    %s235 = ssub.s32 0, %s234
    %s236 = smul.u32 %s233, %s235
    %s237 = sadd.s32 0, %s236
    %s238 = smul.u32 16, %s237
    %v239 = vld [vmem:[%s0] sm:$0xff]
    %v240 = vld [vmem:[%s0 + $0x8] sm:$0xff]
    %v241 = vld [vmem:[%s169] sm:$0xff]
    %v242 = vld [vmem:[%s169 + $0x8] sm:$0xff]
    %v243 = vld [vmem:[%s169 + $0x10] sm:$0xff]
    %v244 = vld [vmem:[%s169 + $0x18] sm:$0xff]
    %v245 = vld [vmem:[%s196] sm:$0x1]
    %v247 = vperm.slane %v245, 0
    %vm249 = vcmask 261120
    %v251 = vsel %vm249, %v239, 0
    %v254 = vsel %vm249, %v240, 0
    %256 = vmatpush.msra.mxu0 0.0
    %257 = vmatpush.msra.mxu0 0.0
    %258 = vmatpush.msra.mxu0 0.0
    %259 = vmatpush.msra.mxu0 0.0
    %260 = vmatpush.msra.mxu0 0.0
    %261 = vmatpush.msra.mxu0 0.0
    %262 = vmatpush.msra.mxu0 0.0
    %263 = vmatpush.msra.mxu0 0.0
    %264 = vmatpush.msra.mxu0 0.0
    %265 = vmatpush.msra.mxu0 0.0
    %266 = vmatpush.msra.mxu0 0.0
    %267 = vmatpush.msra.mxu0 0.0
    %268 = vmatpush.msra.mxu0 %v244
    %269 = vmatpush.msra.mxu0 %v243
    %270 = vmatpush.msra.mxu0 %v242
    %271 = vmatpush.msra.mxu0 %v241
    %272 = vmatmul.f32.gmra.mxu0 %v251
    %v273 = vpop.f32.mrf.mxu0
    %v274 = vadd.f32 %v247, %v273
    %275 = vmatmul.f32.gmra.mxu0 %v254
    %v276 = vpop.f32.mrf.mxu0
    %v277 = vadd.f32 %v247, %v276
    %278 = vdwg.mxu0
    %v279 = vmul.f32 %v274, 0.5
    %v280 = vmul.f32 %v277, 0.5
    %v281 = vmul.f32 %v274, %v274
    %v282 = vmul.f32 %v277, %v277
    %v283 = vmul.f32 %v281, %v274
    %v284 = vmul.f32 %v282, %v277
    %v285 = vmul.f32 %v283, 0.044715
    %v286 = vmul.f32 %v284, 0.044715
    %v287 = vadd.f32 %v274, %v285
    %v288 = vadd.f32 %v277, %v286
    %v289 = vmul.f32 %v287, 0.7978846
    %v290 = vmul.f32 %v288, 0.7978846
    %v291 = vtanh.pop %v289
    %v292 = vtanh.pop %v290
    %v293 = vadd.f32 %v291, 1.0
    %v294 = vadd.f32 %v292, 1.0
    %v295 = vmul.f32 %v279, %v293
    %v296 = vmul.f32 %v280, %v294
    %v297 = vld [vmem:[%s225] sm:$0xff]
    %v298 = vld [vmem:[%s225 + $0x8] sm:$0xff]
    %v299 = vld [vmem:[%s225 + $0x10] sm:$0xff]
    %v300 = vld [vmem:[%s225 + $0x18] sm:$0xff]
    %v301 = vld [vmem:[%s225 + $0x20] sm:$0xff]
    %v302 = vld [vmem:[%s225 + $0x28] sm:$0xff]
    %v303 = vld [vmem:[%s225 + $0x30] sm:$0xff]
    %v304 = vld [vmem:[%s225 + $0x38] sm:$0xff]
    %v305 = vld [vmem:[%s225 + $0x40] sm:$0xff]
    %v306 = vld [vmem:[%s225 + $0x48] sm:$0xff]
    %v307 = vld [vmem:[%s225 + $0x50] sm:$0xff]
    %v308 = vld [vmem:[%s225 + $0x58] sm:$0xff]
    %v309 = vld [vmem:[%s225 + $0x60] sm:$0xff]
    %v310 = vld [vmem:[%s225 + $0x68] sm:$0xff]
    %v311 = vld [vmem:[%s225 + $0x70] sm:$0xff]
    %v312 = vld [vmem:[%s225 + $0x78] sm:$0xff]
    %313 = vmatpush.msra.mxu0 %v312
    %314 = vmatpush.msra.mxu0 %v311
    %315 = vmatpush.msra.mxu0 %v310
    %316 = vmatpush.msra.mxu0 %v309
    %317 = vmatpush.msra.mxu0 %v308
    %318 = vmatpush.msra.mxu0 %v307
    %319 = vmatpush.msra.mxu0 %v306
    %320 = vmatpush.msra.mxu0 %v305
    %321 = vmatpush.msra.mxu0 %v304
    %322 = vmatpush.msra.mxu0 %v303
    %323 = vmatpush.msra.mxu0 %v302
    %324 = vmatpush.msra.mxu0 %v301
    %325 = vmatpush.msra.mxu0 %v300
    %326 = vmatpush.msra.mxu0 %v299
    %327 = vmatpush.msra.mxu0 %v298
    %328 = vmatpush.msra.mxu0 %v297
    %329 = vmatmul.f32.gmra.mxu0 %v295
    %v330 = vpop.f32.mrf.mxu0
    %v331 = vadd.f32 0.0, %v330
    %332 = vmatmul.f32.gmra.mxu0 %v296
    %v333 = vpop.f32.mrf.mxu0
    %v334 = vadd.f32 0.0, %v333
    %335 = vdwg.mxu0
    %p336 = scmp.eq.s32.totalorder 0, 0
    // Predicated region
    $region22: #{mlp_pallas.1} parent=1 // pred_check
      %p337 = pneg %p336
    $region23: #{mlp_pallas.1} parent=1 // pred_check_branch
      %339 = sbr.rel (%p337) target = $region25
    $region24: #{mlp_pallas.1} parent=1 // pred_region
      %340 = vst.msk [vmem:[#allocation2] sm:$0xff] %vm249, %v331
      %341 = vst.msk [vmem:[#allocation2 + $0x8] sm:$0xff] %vm249, %v334
    $region25: #{mlp_pallas.1} parent=1 // pred_fallthru
      _
    %p342 = scmp.gt.s32.totalorder 0, 0
    // Predicated region
    $region26: #{mlp_pallas.1} parent=1 // pred_check
      %p343 = pneg %p342
    $region27: #{mlp_pallas.1} parent=1 // pred_check_branch
      %345 = sbr.rel (%p343) target = $region29
    $region28: #{mlp_pallas.1} parent=1 // pred_region
      %v346 = vld [vmem:[#allocation2] sm:$0xff]
      %v347 = vld [vmem:[#allocation2 + $0x8] sm:$0xff]
      %v348 = vadd.f32 %v346, %v331
      %v349 = vadd.f32 %v347, %v334
      %350 = vst.msk [vmem:[#allocation2] sm:$0xff] %vm249, %v348
      %351 = vst.msk [vmem:[#allocation2 + $0x8] sm:$0xff] %vm249, %v349
    $region29: #{mlp_pallas.1} parent=1 // pred_fallthru
      _
    // Predicated region
    $region30: #{mlp_pallas.1} parent=1 // pred_check
      %p352 = pneg %p336
    $region31: #{mlp_pallas.1} parent=1 // pred_check_branch
      %354 = sbr.rel (%p352) target = $region33
    $region32: #{mlp_pallas.1} parent=1 // pred_region
      %v355 = vld [vmem:[#allocation2] sm:$0xff]
      %v356 = vld [vmem:[#allocation2 + $0x8] sm:$0xff]
      %v357 = vld [vmem:[%s4] sm:$0x1]
      %v359 = vperm.slane %v357, 0
      %v361 = vadd.f32 %v355, %v359
      %v362 = vadd.f32 %v356, %v359
      %363 = vst.msk [vmem:[#allocation3] sm:$0xff] %vm249, %v361
      %364 = vst.msk [vmem:[#allocation3 + $0x8] sm:$0xff] %vm249, %v362
    $region33: #{mlp_pallas.1} parent=1 // pred_fallthru
      _
    // Predicated region
    $region34: #{mlp_pallas.1} parent=1 // pred_check
      _
    $region35: #{mlp_pallas.1} parent=1 // pred_check_branch
      %366 = sbr.rel (0) target = $region37
    $region36: #{mlp_pallas.1} parent=1 // pred_region
      %368 = vsyncadd [#allocation4], 0
      %s369 = sshll.u32 [#allocation3], 4
      %s370 = int_to_ptr.vmem [resolvable:$true] %s369
      %s371 = sshll.u32 %s5, 4
      %s372 = int_to_ptr.hbm [resolvable:$true] %s371
      %377 = dma.vmem_to_hbm [thread:$0]  %s370, 256, %s372, [#allocation4], 128, 128, 8
    $region37: #{mlp_pallas.1} parent=1 // pred_fallthru
      _
    // Predicated region
    $region38: #{mlp_pallas.1} parent=1 // pred_check
      _
    $region39: #{mlp_pallas.1} parent=1 // pred_check_branch
      %379 = sbr.rel (0) target = $region41
    $region40: #{mlp_pallas.1} parent=1 // pred_region
      %381 = dma.done [#allocation4], 256
    $region41: #{mlp_pallas.1} parent=1 // pred_fallthru
      _
    %382 = vsyncpa [#allocation4], 1

</llo_original>
